<compile_context>
chip_gen: v6e
topology: v6e:2x2x1
jax: 0.10.0
libtpu: 0.0.40
codegen_flags: <defaults>
</compile_context>

<pallas_src>
import jax
import jax.numpy as jnp
from jax.experimental import pallas as pl
from jax.experimental.pallas import tpu as pltpu


def _round_up(x: int, m: int) -> int:
    return (x + m - 1) // m * m


def _curiosity_kernel(state_ref, act_ref, ns_ref,
                      w1sT_ref, w1aT_ref, b1T_ref, w2T_ref, b2T_ref,
                      out_ref):
    """One batch tile, batch mapped to the MXU N / lane axis.

    state_ref : [TB, D]  f32   current-state tile (streamed)
    act_ref   : [1, TB]  int32 action tile, lane-major (streamed)
    ns_ref    : [TB, D]  f32   next-state tile (streamed)
    w1sT_ref  : [H, D]   first-linear weight (state part), transposed (resident)
    w1aT_ref  : [H, 5]   first-linear weight (one-hot part), transposed (resident)
    b1T_ref   : [H, 1]   first-linear bias (resident)
    w2T_ref   : [D, H]   second-linear weight, transposed (resident)
    b2T_ref   : [D, 1]   second-linear bias (resident)
    out_ref   : [1, TB]  per-row curiosity reward (lane-dense store)
    """
    state = state_ref[...]                         # [TB, D]
    act = act_ref[...]                             # [1, TB] int32
    tb, d = state.shape
    h_dim = w1aT_ref.shape[0]

    # ---- Layer 1: batch on lanes. hT[H,TB] = w1sT[H,D] . state^T[D,TB] ----
    hT = jax.lax.dot_general(
        w1sT_ref[...], state, (((1,), (1,)), ((), ())),
        preferred_element_type=jnp.float32)        # [H, TB]

    # One-hot contribution on the VPU (5-way select of w1aT columns), keeping
    # it off the saturated MXU slot: hT[:, t] += w1aT[:, act[t]].
    w1aT = w1aT_ref[...]                           # [H, 5]
    act_b = jnp.broadcast_to(act, (h_dim, tb))     # hoisted int32 sublane bcast
    g = w1aT[:, 0:1]                               # default: action == 0
    for a in range(1, 5):
        g = jnp.where(act_b == a, w1aT[:, a:a + 1], g)   # -> [H, TB]

    hT = jnp.maximum(hT + b1T_ref[...] + g, 0.0)   # bias + one-hot, ReLU

    # ---- Layer 2: predT[D,TB] = w2T[D,H] @ hT[H,TB] + b2 ------------------
    predT = jnp.dot(w2T_ref[...], hT,
                    preferred_element_type=jnp.float32) + b2T_ref[...]

    # Bring next_state to the lane-dense [D, TB] layout via a tiny identity
    # matmul (ceil(D/8) pushes per 256-lane pass).
    # TODO(synk): an XLU transpose (pltpu.einshape) would free these MXU
    # pushes if profiling shows the MXU slot still binding.
    ri = jax.lax.broadcasted_iota(jnp.int32, (d, d), 0)
    ci = jax.lax.broadcasted_iota(jnp.int32, (d, d), 1)
    eye_d = (ri == ci).astype(jnp.float32)
    nsT = jax.lax.dot_general(
        eye_d, ns_ref[...], (((1,), (1,)), ((), ())),
        preferred_element_type=jnp.float32)        # [D, TB]

    diff = predT - nsT                             # fully lane-dense elementwise
    # Row mean of squares -> [1, TB] lane-major (sublane reduce over D rows).
    out_ref[...] = jnp.sum(diff * diff, axis=0, keepdims=True) * (1.0 / d)


def curiosity_forward(state, action, next_state, params, *, block_rows=2048):
    """Curiosity reward = mean((MLP([state, onehot(action)]) - next_state)^2, -1)."""
    w1, b1, w2, b2 = params
    B, D = state.shape
    H = w1.shape[1]

    state = state.astype(jnp.float32)
    next_state = next_state.astype(jnp.float32)

    # Tiny weight prep (free): transpose so the batch sits on the lane axis.
    w1sT = jnp.transpose(w1[:D])                   # [H, D]
    w1aT = jnp.transpose(w1[D:])                   # [H, 5]
    b1T = jnp.reshape(b1, (H, 1))                  # [H, 1]
    w2T = jnp.transpose(w2)                        # [D, H]
    b2T = jnp.reshape(b2, (D, 1))                  # [D, 1]

    # Batch tile: multiple of 128 (lane-dense [1,TB] output stores), big enough
    # to amortize ~0.35us/step grid overhead, small enough that the lane-padded
    # double-buffered streamed set (~4.5 MiB at TB=2048) fits every gen's
    # scoped VMEM with headroom.
    TB = _round_up(max(int(block_rows), 128), 128)
    if B >= TB:
        # Large batch: stream ragged tiles straight from HBM -- no jnp.pad copy.
        # OOB tail rows only feed output lanes >= B (masked on store, sliced off).
        rows = B
    else:
        # Small batch: one block equal to the (sublane-padded) array; pad <= 7 rows.
        TB = _round_up(max(B, 1), 8)
        rows = TB
        if rows != B:
            pad = rows - B
            state = jnp.pad(state, ((0, pad), (0, 0)))
            next_state = jnp.pad(next_state, ((0, pad), (0, 0)))
            action = jnp.pad(action, ((0, pad),))

    act_row = jnp.reshape(action.astype(jnp.int32), (1, rows))   # lane-major

    grid = (pl.cdiv(rows, TB),)
    tile2d = lambda i: (i, 0)      # streamed [TB, D] tiles
    lane1d = lambda i: (0, i)      # streamed [1, TB] rows / output
    const = lambda i: (0, 0)       # resident weights (not re-DMA'd)

    out = pl.pallas_call(
        _curiosity_kernel,
        out_shape=jax.ShapeDtypeStruct((1, rows), jnp.float32),
        grid=grid,
        in_specs=[
            pl.BlockSpec((TB, D), tile2d),     # state
            pl.BlockSpec((1, TB), lane1d),     # action (int32, lane-major)
            pl.BlockSpec((TB, D), tile2d),     # next_state
            pl.BlockSpec((H, D), const),       # w1_state^T
            pl.BlockSpec((H, 5), const),       # w1_act^T
            pl.BlockSpec((H, 1), const),       # b1^T
            pl.BlockSpec((D, H), const),       # w2^T
            pl.BlockSpec((D, 1), const),       # b2^T
        ],
        out_specs=pl.BlockSpec((1, TB), lane1d),
        compiler_params=pltpu.CompilerParams(
            dimension_semantics=("parallel",),   # megacore split on v7x
            vmem_limit_bytes=32 * 1024 * 1024,   # safe on v5e/v6e/v7x
        ),
    )(state, act_row, next_state, w1sT, w1aT, b1T, w2T, b2T)

    return out[0, :B]   # [B]


def init_params(key, input_size, hidden_size=32):
    """Init matching nn.Linear default U(-1/sqrt(fan_in), 1/sqrt(fan_in)).

    Weights stored as [in, out]; w1 covers the full concatenated input (D+5)
    and is split / transposed inside the wrapper.
    """
    k1, k2, k3, k4 = jax.random.split(key, 4)
    fan1 = input_size + 5
    bound1 = 1.0 / jnp.sqrt(fan1)
    w1 = jax.random.uniform(k1, (fan1, hidden_size), jnp.float32, -bound1, bound1)
    b1 = jax.random.uniform(k2, (1, hidden_size), jnp.float32, -bound1, bound1)
    fan2 = hidden_size
    bound2 = 1.0 / jnp.sqrt(fan2)
    w2 = jax.random.uniform(k3, (hidden_size, input_size), jnp.float32, -bound2, bound2)
    b2 = jax.random.uniform(k4, (1, input_size), jnp.float32, -bound2, bound2)
    return (w1, b1, w2, b2)


def _reference(state, action, next_state, params):
    """Pure-JAX reference (mirrors the PyTorch module) for correctness check."""
    w1, b1, w2, b2 = params
    oh = jax.nn.one_hot(action, 5, dtype=state.dtype)
    x = jnp.concatenate([state, oh], axis=1)
    hid = jnp.maximum(x @ w1 + b1.reshape(1, -1), 0.0)
    pred = hid @ w2 + b2.reshape(1, -1)
    return jnp.mean((pred - next_state) ** 2, axis=1)


if __name__ == "__main__":
    INPUT_SIZE = 16
    HIDDEN = 32

    key = jax.random.PRNGKey(0)
    k_s, k_a, k_n, k_p = jax.random.split(key, 4)
    params = init_params(k_p, INPUT_SIZE, HIDDEN)

    # Small demo batch (single-block path).
    B = 8
    state = jax.random.normal(k_s, (B, INPUT_SIZE), jnp.float32)
    action = jax.random.randint(k_a, (B,), 0, 5, jnp.int32)
    next_state = jax.random.normal(k_n, (B, INPUT_SIZE), jnp.float32)

    reward = jax.block_until_ready(
        curiosity_forward(state, action, next_state, params))
    ref = _reference(state, action, next_state, params)
    assert reward.shape == (B,)
    assert jnp.allclose(reward, ref, atol=1e-4, rtol=1e-4), (reward, ref)

    # Exercise the streamed multi-tile path with a ragged (unpadded) tail.
    B2 = 300
    k_s2, k_a2, k_n2 = jax.random.split(jax.random.PRNGKey(1), 3)
    state2 = jax.random.normal(k_s2, (B2, INPUT_SIZE), jnp.float32)
    action2 = jax.random.randint(k_a2, (B2,), 0, 5, jnp.int32)
    next_state2 = jax.random.normal(k_n2, (B2, INPUT_SIZE), jnp.float32)
    reward2 = jax.block_until_ready(
        curiosity_forward(state2, action2, next_state2, params, block_rows=128))
    ref2 = _reference(state2, action2, next_state2, params)
    assert reward2.shape == (B2,)
    assert jnp.allclose(reward2, ref2, atol=1e-4, rtol=1e-4), (reward2, ref2)

    print("KERNEL_OK")
</pallas_src>

<mosaic_0001>
module attributes {stable_mosaic.version = 11 : i64} {
  func.func @_curiosity_kernel(%arg0: i32, %arg1: memref<8x16xf32, #tpu.memory_space<vmem>>, %arg2: memref<1x8xi32, #tpu.memory_space<vmem>>, %arg3: memref<8x16xf32, #tpu.memory_space<vmem>>, %arg4: memref<32x16xf32, #tpu.memory_space<vmem>>, %arg5: memref<32x5xf32, #tpu.memory_space<vmem>>, %arg6: memref<32x1xf32, #tpu.memory_space<vmem>>, %arg7: memref<16x32xf32, #tpu.memory_space<vmem>>, %arg8: memref<16x1xf32, #tpu.memory_space<vmem>>, %arg9: memref<1x8xf32, #tpu.memory_space<vmem>>) attributes {dimension_semantics = [#tpu.dimension_semantics<parallel>], iteration_bounds = array<i64: 1>, scalar_prefetch = 0 : i64, scratch_operands = 0 : i64, tpu.core_type = #tpu.core_type<tc>, window_params = [{transform_indices = @transform_0, window_bounds = array<i64: 8, 16>}, {transform_indices = @transform_1, window_bounds = array<i64: 1, 8>}, {transform_indices = @transform_2, window_bounds = array<i64: 8, 16>}, {pipeline_mode = #tpu.pipeline_mode<synchronous>, transform_indices = @transform_3, window_bounds = array<i64: 32, 16>}, {pipeline_mode = #tpu.pipeline_mode<synchronous>, transform_indices = @transform_4, window_bounds = array<i64: 32, 5>}, {pipeline_mode = #tpu.pipeline_mode<synchronous>, transform_indices = @transform_5, window_bounds = array<i64: 32, 1>}, {pipeline_mode = #tpu.pipeline_mode<synchronous>, transform_indices = @transform_6, window_bounds = array<i64: 16, 32>}, {pipeline_mode = #tpu.pipeline_mode<synchronous>, transform_indices = @transform_7, window_bounds = array<i64: 16, 1>}, {transform_indices = @transform_8, window_bounds = array<i64: 1, 8>}]} {
    %c0 = arith.constant 0 : index
    %c0_0 = arith.constant 0 : index
    %0 = vector.load %arg1[%c0, %c0_0] : memref<8x16xf32, #tpu.memory_space<vmem>>, vector<8x16xf32>
    %c0_1 = arith.constant 0 : index
    %c0_2 = arith.constant 0 : index
    %1 = vector.load %arg2[%c0_1, %c0_2] : memref<1x8xi32, #tpu.memory_space<vmem>>, vector<1x8xi32>
    %c0_3 = arith.constant 0 : index
    %c0_4 = arith.constant 0 : index
    %2 = vector.load %arg4[%c0_3, %c0_4] : memref<32x16xf32, #tpu.memory_space<vmem>>, vector<32x16xf32>
    %cst = arith.constant dense<0.000000e+00> : vector<32x8xf32>
    %3 = tpu.matmul %2, %0, %cst {dimension_numbers = #tpu.dot_dimension_numbers<[1], [1], [0], [0], [0, 0, 1, 0], [], []>} : vector<32x16xf32>, vector<8x16xf32>, vector<32x8xf32> -> vector<32x8xf32>
    %c0_5 = arith.constant 0 : index
    %c0_6 = arith.constant 0 : index
    %4 = vector.load %arg5[%c0_5, %c0_6] : memref<32x5xf32, #tpu.memory_space<vmem>>, vector<32x5xf32>
    %5 = vector.shape_cast %1 : vector<1x8xi32> to vector<1x8xi32>
    %6 = vector.broadcast %5 : vector<1x8xi32> to vector<32x8xi32>
    %7 = vector.extract_strided_slice %4 {offsets = [0, 0], sizes = [32, 1], strides = [1, 1]} : vector<32x5xf32> to vector<32x1xf32>
    %c1_i32 = arith.constant 1 : i32
    %8 = vector.broadcast %c1_i32 : i32 to vector<32x8xi32>
    %9 = arith.cmpi eq, %6, %8 : vector<32x8xi32>
    %10 = vector.extract_strided_slice %4 {offsets = [0, 1], sizes = [32, 1], strides = [1, 1]} : vector<32x5xf32> to vector<32x1xf32>
    %11 = vector.shape_cast %10 : vector<32x1xf32> to vector<32x1xf32>
    %12 = vector.broadcast %11 : vector<32x1xf32> to vector<32x8xf32>
    %13 = vector.shape_cast %7 : vector<32x1xf32> to vector<32x1xf32>
    %14 = vector.broadcast %13 : vector<32x1xf32> to vector<32x8xf32>
    %15 = arith.select %9, %12, %14 : vector<32x8xi1>, vector<32x8xf32>
    %c2_i32 = arith.constant 2 : i32
    %16 = vector.broadcast %c2_i32 : i32 to vector<32x8xi32>
    %17 = arith.cmpi eq, %6, %16 : vector<32x8xi32>
    %18 = vector.extract_strided_slice %4 {offsets = [0, 2], sizes = [32, 1], strides = [1, 1]} : vector<32x5xf32> to vector<32x1xf32>
    %19 = vector.shape_cast %18 : vector<32x1xf32> to vector<32x1xf32>
    %20 = vector.broadcast %19 : vector<32x1xf32> to vector<32x8xf32>
    %21 = arith.select %17, %20, %15 : vector<32x8xi1>, vector<32x8xf32>
    %c3_i32 = arith.constant 3 : i32
    %22 = vector.broadcast %c3_i32 : i32 to vector<32x8xi32>
    %23 = arith.cmpi eq, %6, %22 : vector<32x8xi32>
    %24 = vector.extract_strided_slice %4 {offsets = [0, 3], sizes = [32, 1], strides = [1, 1]} : vector<32x5xf32> to vector<32x1xf32>
    %25 = vector.shape_cast %24 : vector<32x1xf32> to vector<32x1xf32>
    %26 = vector.broadcast %25 : vector<32x1xf32> to vector<32x8xf32>
    %27 = arith.select %23, %26, %21 : vector<32x8xi1>, vector<32x8xf32>
    %c4_i32 = arith.constant 4 : i32
    %28 = vector.broadcast %c4_i32 : i32 to vector<32x8xi32>
    %29 = arith.cmpi eq, %6, %28 : vector<32x8xi32>
    %30 = vector.extract_strided_slice %4 {offsets = [0, 4], sizes = [32, 1], strides = [1, 1]} : vector<32x5xf32> to vector<32x1xf32>
    %31 = vector.shape_cast %30 : vector<32x1xf32> to vector<32x1xf32>
    %32 = vector.broadcast %31 : vector<32x1xf32> to vector<32x8xf32>
    %33 = arith.select %29, %32, %27 : vector<32x8xi1>, vector<32x8xf32>
    %c0_7 = arith.constant 0 : index
    %c0_8 = arith.constant 0 : index
    %34 = vector.load %arg6[%c0_7, %c0_8] : memref<32x1xf32, #tpu.memory_space<vmem>>, vector<32x1xf32>
    %35 = vector.broadcast %34 : vector<32x1xf32> to vector<32x8xf32>
    %36 = arith.addf %3, %35 : vector<32x8xf32>
    %37 = arith.addf %36, %33 : vector<32x8xf32>
    %cst_9 = arith.constant 0.000000e+00 : f32
    %38 = vector.broadcast %cst_9 : f32 to vector<32x8xf32>
    %39 = arith.maximumf %37, %38 : vector<32x8xf32>
    %c0_10 = arith.constant 0 : index
    %c0_11 = arith.constant 0 : index
    %40 = vector.load %arg7[%c0_10, %c0_11] : memref<16x32xf32, #tpu.memory_space<vmem>>, vector<16x32xf32>
    %cst_12 = arith.constant dense<0.000000e+00> : vector<16x8xf32>
    %41 = tpu.matmul %40, %39, %cst_12 {dimension_numbers = #tpu.dot_dimension_numbers<[1], [0], [0], [1], [0, 0, 1, 1], [], []>} : vector<16x32xf32>, vector<32x8xf32>, vector<16x8xf32> -> vector<16x8xf32>
    %c0_13 = arith.constant 0 : index
    %c0_14 = arith.constant 0 : index
    %42 = vector.load %arg8[%c0_13, %c0_14] : memref<16x1xf32, #tpu.memory_space<vmem>>, vector<16x1xf32>
    %43 = vector.broadcast %42 : vector<16x1xf32> to vector<16x8xf32>
    %44 = arith.addf %41, %43 : vector<16x8xf32>
    %45 = tpu.iota {dimensions = array<i32: 0>} : vector<16x16xi32>
    %46 = tpu.iota {dimensions = array<i32: 1>} : vector<16x16xi32>
    %47 = arith.cmpi eq, %45, %46 : vector<16x16xi32>
    %48 = arith.extui %47 : vector<16x16xi1> to vector<16x16xi32>
    %49 = arith.sitofp %48 : vector<16x16xi32> to vector<16x16xf32>
    %c0_15 = arith.constant 0 : index
    %c0_16 = arith.constant 0 : index
    %50 = vector.load %arg3[%c0_15, %c0_16] : memref<8x16xf32, #tpu.memory_space<vmem>>, vector<8x16xf32>
    %cst_17 = arith.constant dense<0.000000e+00> : vector<16x8xf32>
    %51 = tpu.matmul %49, %50, %cst_17 {dimension_numbers = #tpu.dot_dimension_numbers<[1], [1], [0], [0], [0, 0, 1, 0], [], []>} : vector<16x16xf32>, vector<8x16xf32>, vector<16x8xf32> -> vector<16x8xf32>
    %52 = arith.subf %44, %51 : vector<16x8xf32>
    %53 = arith.mulf %52, %52 : vector<16x8xf32>
    %cst_18 = arith.constant dense<0.000000e+00> : vector<8xf32>
    %54 = vector.multi_reduction <add>, %53, %cst_18 [0] : vector<16x8xf32> to vector<8xf32>
    %55 = vector.shape_cast %54 : vector<8xf32> to vector<1x8xf32>
    %cst_19 = arith.constant 6.250000e-02 : f32
    %56 = vector.broadcast %cst_19 : f32 to vector<1x8xf32>
    %57 = arith.mulf %55, %56 : vector<1x8xf32>
    %c0_20 = arith.constant 0 : index
    %c0_21 = arith.constant 0 : index
    %58 = vector.load %arg9[%c0_20, %c0_21] : memref<1x8xf32, #tpu.memory_space<vmem>>, vector<1x8xf32>
    tpu.vector_store %arg9[%c0_20, %c0_21], %57 {strides = array<i32>} : memref<1x8xf32, #tpu.memory_space<vmem>>, vector<1x8xf32>,
    return
  }
  func.func @transform_0(%arg0: i32) -> (i32, i32) {
    %c0_i32 = arith.constant 0 : i32
    %c0_i32_0 = arith.constant 0 : i32
    return %arg0, %c0_i32 : i32, i32
  }
  func.func @transform_1(%arg0: i32) -> (i32, i32) {
    %c0_i32 = arith.constant 0 : i32
    %c0_i32_0 = arith.constant 0 : i32
    return %c0_i32, %arg0 : i32, i32
  }
  func.func @transform_2(%arg0: i32) -> (i32, i32) {
    %c0_i32 = arith.constant 0 : i32
    %c0_i32_0 = arith.constant 0 : i32
    return %arg0, %c0_i32 : i32, i32
  }
  func.func @transform_3(%arg0: i32) -> (i32, i32) {
    %c0_i32 = arith.constant 0 : i32
    %c0_i32_0 = arith.constant 0 : i32
    %c0_i32_1 = arith.constant 0 : i32
    return %c0_i32, %c0_i32_0 : i32, i32
  }
  func.func @transform_4(%arg0: i32) -> (i32, i32) {
    %c0_i32 = arith.constant 0 : i32
    %c0_i32_0 = arith.constant 0 : i32
    %c0_i32_1 = arith.constant 0 : i32
    return %c0_i32, %c0_i32_0 : i32, i32
  }
  func.func @transform_5(%arg0: i32) -> (i32, i32) {
    %c0_i32 = arith.constant 0 : i32
    %c0_i32_0 = arith.constant 0 : i32
    %c0_i32_1 = arith.constant 0 : i32
    return %c0_i32, %c0_i32_0 : i32, i32
  }
  func.func @transform_6(%arg0: i32) -> (i32, i32) {
    %c0_i32 = arith.constant 0 : i32
    %c0_i32_0 = arith.constant 0 : i32
    %c0_i32_1 = arith.constant 0 : i32
    return %c0_i32, %c0_i32_0 : i32, i32
  }
  func.func @transform_7(%arg0: i32) -> (i32, i32) {
    %c0_i32 = arith.constant 0 : i32
    %c0_i32_0 = arith.constant 0 : i32
    %c0_i32_1 = arith.constant 0 : i32
    return %c0_i32, %c0_i32_0 : i32, i32
  }
  func.func @transform_8(%arg0: i32) -> (i32, i32) {
    %c0_i32 = arith.constant 0 : i32
    %c0_i32_0 = arith.constant 0 : i32
    return %c0_i32, %arg0 : i32, i32
  }
}

</mosaic_0001>

<llo_original>
// kernel: tpu_custom_call.1
$region0: #{tpu_custom_call.1}
  #allocation0 [shape = 'u32[]', space=smem, size = 0x4, offset = 0x4, fixed_abs, tag = 'smem constant byte address 0x4 - core index']
  #allocation1 [shape = 'u32[144,128]{1,0:T(1,128)}', space=vmem, size = 0x12000, scoped, tag = 'internal scratch']
  %s0 = inlined_call_operand.vmem [shape: f32[8,16], index: 0, kind: input, shape index: {}]
  %s1 = inlined_call_operand.vmem [shape: s32[1,8], index: 1, kind: input, shape index: {}]
  %s2 = inlined_call_operand.vmem [shape: f32[8,16], index: 2, kind: input, shape index: {}]
  %s3 = inlined_call_operand.vmem [shape: f32[32,16], index: 3, kind: input, shape index: {}]
  %s4 = inlined_call_operand.vmem [shape: f32[32,5], index: 4, kind: input, shape index: {}]
  %s5 = inlined_call_operand.vmem [shape: f32[32,1], index: 5, kind: input, shape index: {}]
  %s6 = inlined_call_operand.vmem [shape: f32[16,32], index: 6, kind: input, shape index: {}]
  %s7 = inlined_call_operand.vmem [shape: f32[16,1], index: 7, kind: input, shape index: {}]
  %s8 = inlined_call_operand.hbm [shape: f32[1,8], index: 8, kind: output, shape index: {}]
  %s9 = sld [smem:[#allocation0]]
  $region42: #{tpu_custom_call.1} parent=0
    _
  %s11 = ssub.s32 1, %s9
  %s12 = scalar_select 0, %s11, %s9
  $region1: #{tpu_custom_call.1} parent=0
    #allocation2 [shape = 'u8[512]{0}', space=vmem, size = 0x400, scoped, tag = 'output window, operand 0, single buffered']
    #allocation3 [shape = 's32[1]{0}', space=sflag, size = 0x4, scoped, tag = 'scoped memory for tpu_custom_call.1']
    %13 = vsyncpa [#allocation3], 0
    // Predicated region
    $region2: #{tpu_custom_call.1} parent=1 // pred_check
      _
    $region3: #{tpu_custom_call.1} parent=1 // pred_check_branch
      %15 = sbr.rel (0) target = $region5
    $region4: #{tpu_custom_call.1} parent=1 // pred_region
      _
    $region5: #{tpu_custom_call.1} parent=1 // pred_fallthru
      _
    // Predicated region
    $region6: #{tpu_custom_call.1} parent=1 // pred_check
      _
    $region7: #{tpu_custom_call.1} parent=1 // pred_check_branch
      %17 = sbr.rel (0) target = $region9
    $region8: #{tpu_custom_call.1} parent=1 // pred_region
      _
    $region9: #{tpu_custom_call.1} parent=1 // pred_fallthru
      _
    // Predicated region
    $region10: #{tpu_custom_call.1} parent=1 // pred_check
      _
    $region11: #{tpu_custom_call.1} parent=1 // pred_check_branch
      %19 = sbr.rel (0) target = $region13
    $region12: #{tpu_custom_call.1} parent=1 // pred_region
      _
    $region13: #{tpu_custom_call.1} parent=1 // pred_fallthru
      _
    // Predicated region
    $region14: #{tpu_custom_call.1} parent=1 // pred_check
      _
    $region15: #{tpu_custom_call.1} parent=1 // pred_check_branch
      %21 = sbr.rel (0) target = $region17
    $region16: #{tpu_custom_call.1} parent=1 // pred_region
      _
    $region17: #{tpu_custom_call.1} parent=1 // pred_fallthru
      _
    // Predicated region
    $region18: #{tpu_custom_call.1} parent=1 // pred_check
      _
    $region19: #{tpu_custom_call.1} parent=1 // pred_check_branch
      %23 = sbr.rel (0) target = $region21
    $region20: #{tpu_custom_call.1} parent=1 // pred_region
      _
    $region21: #{tpu_custom_call.1} parent=1 // pred_fallthru
      _
    // Predicated region
    $region22: #{tpu_custom_call.1} parent=1 // pred_check
      _
    $region23: #{tpu_custom_call.1} parent=1 // pred_check_branch
      %25 = sbr.rel (0) target = $region25
    $region24: #{tpu_custom_call.1} parent=1 // pred_region
      _
    $region25: #{tpu_custom_call.1} parent=1 // pred_fallthru
      _
    // Predicated region
    $region26: #{tpu_custom_call.1} parent=1 // pred_check
      _
    $region27: #{tpu_custom_call.1} parent=1 // pred_check_branch
      %27 = sbr.rel (0) target = $region29
    $region28: #{tpu_custom_call.1} parent=1 // pred_region
      _
    $region29: #{tpu_custom_call.1} parent=1 // pred_fallthru
      _
    // Predicated region
    $region30: #{tpu_custom_call.1} parent=1 // pred_check
      _
    $region31: #{tpu_custom_call.1} parent=1 // pred_check_branch
      %29 = sbr.rel (0) target = $region33
    $region32: #{tpu_custom_call.1} parent=1 // pred_region
      _
    $region33: #{tpu_custom_call.1} parent=1 // pred_fallthru
      _
    %v30 = vld [vmem:[%s0] sm:$0xff]
    %v31 = vld [vmem:[%s1] sm:$0x1]
    %v32 = vld [vmem:[%s3] sm:$0xff]
    %v33 = vld [vmem:[%s3 + $0x8] sm:$0xff]
    %v34 = vld [vmem:[%s3 + $0x10] sm:$0xff]
    %v35 = vld [vmem:[%s3 + $0x18] sm:$0xff]
    %v36 = vld [vmem:[%s4] sm:$0xff]
    %v37 = vld [vmem:[%s4 + $0x8] sm:$0xff]
    %v38 = vld [vmem:[%s4 + $0x10] sm:$0xff]
    %v39 = vld [vmem:[%s4 + $0x18] sm:$0xff]
    %v40 = vlaneseq
    %v41 = vshrl.u32 %v40, 7
    %v42 = vsub.s32 0, %v41
    %v43 = vrot.slane %v31, %v42
    %vm44 = vcmp.eq.s32.totalorder %v43, 1
    %46 = vset.pattern.permute.xlu0 1
    %47 = vperm.xlu0 %46, %v36
    %v48 = vpop.permute.xlu0 %47
    %51 = vset.pattern.permute.xlu0 1
    %52 = vperm.xlu0 %51, %v37
    %v53 = vpop.permute.xlu0 %52
    %56 = vset.pattern.permute.xlu0 1
    %57 = vperm.xlu0 %56, %v38
    %v58 = vpop.permute.xlu0 %57
    %61 = vset.pattern.permute.xlu0 1
    %62 = vperm.xlu0 %61, %v39
    %v63 = vpop.permute.xlu0 %62
    %65 = vset.pattern.permute.xlu0 0
    %66 = vperm.xlu0 %65, %v36
    %v67 = vpop.permute.xlu0 %66
    %69 = vset.pattern.permute.xlu0 0
    %70 = vperm.xlu0 %69, %v37
    %v71 = vpop.permute.xlu0 %70
    %73 = vset.pattern.permute.xlu0 0
    %74 = vperm.xlu0 %73, %v38
    %v75 = vpop.permute.xlu0 %74
    %77 = vset.pattern.permute.xlu0 0
    %78 = vperm.xlu0 %77, %v39
    %v79 = vpop.permute.xlu0 %78
    %v81 = vsel %vm44, %v48, %v67
    %v82 = vsel %vm44, %v53, %v71
    %v83 = vsel %vm44, %v58, %v75
    %v84 = vsel %vm44, %v63, %v79
    %vm85 = vcmp.eq.s32.totalorder %v43, 2
    %86 = vset.pattern.permute.xlu0 2
    %87 = vperm.xlu0 %86, %v36
    %v88 = vpop.permute.xlu0 %87
    %90 = vset.pattern.permute.xlu0 2
    %91 = vperm.xlu0 %90, %v37
    %v92 = vpop.permute.xlu0 %91
    %94 = vset.pattern.permute.xlu0 2
    %95 = vperm.xlu0 %94, %v38
    %v96 = vpop.permute.xlu0 %95
    %98 = vset.pattern.permute.xlu0 2
    %99 = vperm.xlu0 %98, %v39
    %v100 = vpop.permute.xlu0 %99
    %v102 = vsel %vm85, %v88, %v81
    %v103 = vsel %vm85, %v92, %v82
    %v104 = vsel %vm85, %v96, %v83
    %v105 = vsel %vm85, %v100, %v84
    %vm106 = vcmp.eq.s32.totalorder %v43, 3
    %107 = vset.pattern.permute.xlu0 3
    %108 = vperm.xlu0 %107, %v36
    %v109 = vpop.permute.xlu0 %108
    %111 = vset.pattern.permute.xlu0 3
    %112 = vperm.xlu0 %111, %v37
    %v113 = vpop.permute.xlu0 %112
    %115 = vset.pattern.permute.xlu0 3
    %116 = vperm.xlu0 %115, %v38
    %v117 = vpop.permute.xlu0 %116
    %119 = vset.pattern.permute.xlu0 3
    %120 = vperm.xlu0 %119, %v39
    %v121 = vpop.permute.xlu0 %120
    %v123 = vsel %vm106, %v109, %v102
    %v124 = vsel %vm106, %v113, %v103
    %v125 = vsel %vm106, %v117, %v104
    %v126 = vsel %vm106, %v121, %v105
    %vm127 = vcmp.eq.s32.totalorder %v43, 4
    %128 = vset.pattern.permute.xlu0 4
    %129 = vperm.xlu0 %128, %v36
    %v130 = vpop.permute.xlu0 %129
    %132 = vset.pattern.permute.xlu0 4
    %133 = vperm.xlu0 %132, %v37
    %v134 = vpop.permute.xlu0 %133
    %136 = vset.pattern.permute.xlu0 4
    %137 = vperm.xlu0 %136, %v38
    %v138 = vpop.permute.xlu0 %137
    %140 = vset.pattern.permute.xlu0 4
    %141 = vperm.xlu0 %140, %v39
    %v142 = vpop.permute.xlu0 %141
    %v144 = vsel %vm127, %v130, %v123
    %v145 = vsel %vm127, %v134, %v124
    %v146 = vsel %vm127, %v138, %v125
    %v147 = vsel %vm127, %v142, %v126
    %v148 = vld [vmem:[%s5] sm:$0xff]
    %v149 = vld [vmem:[%s5 + $0x8] sm:$0xff]
    %v150 = vld [vmem:[%s5 + $0x10] sm:$0xff]
    %v151 = vld [vmem:[%s5 + $0x18] sm:$0xff]
    %153 = vset.pattern.permute.xlu0 0
    %154 = vperm.xlu0 %153, %v148
    %v155 = vpop.permute.xlu0 %154
    %158 = vset.pattern.permute.xlu0 0
    %159 = vperm.xlu0 %158, %v149
    %v160 = vpop.permute.xlu0 %159
    %163 = vset.pattern.permute.xlu0 0
    %164 = vperm.xlu0 %163, %v150
    %v165 = vpop.permute.xlu0 %164
    %168 = vset.pattern.permute.xlu0 0
    %169 = vperm.xlu0 %168, %v151
    %v170 = vpop.permute.xlu0 %169
    %vm172 = vcmask 130048
    %v174 = vsel %vm172, %v32, 0
    %v177 = vsel %vm172, %v33, 0
    %v180 = vsel %vm172, %v34, 0
    %v183 = vsel %vm172, %v35, 0
    %v186 = vsel %vm172, %v30, 0
    %188 = vmatprep.subr.mxu0 0.0
    %189 = vmatpush1.xpose.msra.mxu0 0.0
    %190 = vmatprep.subr.mxu0 0.0
    %191 = vmatpush1.xpose.msra.mxu0 0.0
    %192 = vmatprep.subr.mxu0 0.0
    %193 = vmatpush1.xpose.msra.mxu0 0.0
    %194 = vmatprep.subr.mxu0 0.0
    %195 = vmatpush1.xpose.msra.mxu0 0.0
    %196 = vmatprep.subr.mxu0 0.0
    %197 = vmatpush1.xpose.msra.mxu0 0.0
    %198 = vmatprep.subr.mxu0 0.0
    %199 = vmatpush1.xpose.msra.mxu0 0.0
    %200 = vmatprep.subr.mxu0 0.0
    %201 = vmatpush1.xpose.msra.mxu0 0.0
    %202 = vmatprep.subr.mxu0 0.0
    %203 = vmatpush1.xpose.msra.mxu0 0.0
    %204 = vmatprep.subr.mxu0 0.0
    %205 = vmatpush1.xpose.msra.mxu0 0.0
    %206 = vmatprep.subr.mxu0 0.0
    %207 = vmatpush1.xpose.msra.mxu0 0.0
    %208 = vmatprep.subr.mxu0 0.0
    %209 = vmatpush1.xpose.msra.mxu0 0.0
    %210 = vmatprep.subr.mxu0 0.0
    %211 = vmatpush1.xpose.msra.mxu0 0.0
    %212 = vmatprep.subr.mxu0 0.0
    %213 = vmatpush1.xpose.msra.mxu0 0.0
    %214 = vmatprep.subr.mxu0 0.0
    %215 = vmatpush1.xpose.msra.mxu0 0.0
    %216 = vmatprep.subr.mxu0 0.0
    %217 = vmatpush1.xpose.msra.mxu0 0.0
    %218 = vmatprep.subr.mxu0 0.0
    %219 = vmatpush1.xpose.msra.mxu0 %v186
    %220 = vmatprep.subr.mxu0 0.0
    %221 = vmatpush2.xpose.msra.mxu0 0.0
    %222 = vmatprep.subr.mxu0 0.0
    %223 = vmatpush2.xpose.msra.mxu0 0.0
    %224 = vmatprep.subr.mxu0 0.0
    %225 = vmatpush2.xpose.msra.mxu0 0.0
    %226 = vmatprep.subr.mxu0 0.0
    %227 = vmatpush2.xpose.msra.mxu0 0.0
    %228 = vmatprep.subr.mxu0 0.0
    %229 = vmatpush2.xpose.msra.mxu0 0.0
    %230 = vmatprep.subr.mxu0 0.0
    %231 = vmatpush2.xpose.msra.mxu0 0.0
    %232 = vmatprep.subr.mxu0 0.0
    %233 = vmatpush2.xpose.msra.mxu0 0.0
    %234 = vmatprep.subr.mxu0 0.0
    %235 = vmatpush2.xpose.msra.mxu0 0.0
    %236 = vmatprep.subr.mxu0 0.0
    %237 = vmatpush2.xpose.msra.mxu0 0.0
    %238 = vmatprep.subr.mxu0 0.0
    %239 = vmatpush2.xpose.msra.mxu0 0.0
    %240 = vmatprep.subr.mxu0 0.0
    %241 = vmatpush2.xpose.msra.mxu0 0.0
    %242 = vmatprep.subr.mxu0 0.0
    %243 = vmatpush2.xpose.msra.mxu0 0.0
    %244 = vmatprep.subr.mxu0 0.0
    %245 = vmatpush2.xpose.msra.mxu0 0.0
    %246 = vmatprep.subr.mxu0 0.0
    %247 = vmatpush2.xpose.msra.mxu0 0.0
    %248 = vmatprep.subr.mxu0 0.0
    %249 = vmatpush2.xpose.msra.mxu0 0.0
    %250 = vmatprep.subr.mxu0 0.0
    %251 = vmatpush2.xpose.msra.mxu0 0.0
    %252 = vmatprep.mubr.f32.mxu0 0.0
    %253 = vmatmul.mubr.f32.gmra.mxu0 %v174
    %v254 = vpop.f32.mrf.mxu0
    %v255 = vadd.f32 %v155, %v254
    %v256 = vpop.f32.mrf.mxu0
    %257 = vmatprep.mubr.f32.mxu0 0.0
    %258 = vmatmul.mubr.f32.gmra.mxu0 %v177
    %v259 = vpop.f32.mrf.mxu0
    %v260 = vadd.f32 %v160, %v259
    %v261 = vpop.f32.mrf.mxu0
    %262 = vmatprep.mubr.f32.mxu0 0.0
    %263 = vmatmul.mubr.f32.gmra.mxu0 %v180
    %v264 = vpop.f32.mrf.mxu0
    %v265 = vadd.f32 %v165, %v264
    %v266 = vpop.f32.mrf.mxu0
    %267 = vmatprep.mubr.f32.mxu0 0.0
    %268 = vmatmul.mubr.f32.gmra.mxu0 %v183
    %v269 = vpop.f32.mrf.mxu0
    %v270 = vadd.f32 %v170, %v269
    %v271 = vpop.f32.mrf.mxu0
    %272 = vdwg.mxu0
    %v273 = vadd.f32 %v255, %v144
    %v274 = vadd.f32 %v260, %v145
    %v275 = vadd.f32 %v265, %v146
    %v276 = vadd.f32 %v270, %v147
    %v277 = vmax.f32 %v273, 0.0
    %v278 = vmax.f32 %v274, 0.0
    %v279 = vmax.f32 %v275, 0.0
    %v280 = vmax.f32 %v276, 0.0
    %v281 = vld [vmem:[%s6] sm:$0xff]
    %v282 = vld [vmem:[%s6 + $0x8] sm:$0xff]
    %v283 = vld [vmem:[%s7] sm:$0xff]
    %v284 = vld [vmem:[%s7 + $0x8] sm:$0xff]
    %286 = vset.pattern.permute.xlu0 0
    %287 = vperm.xlu0 %286, %v283
    %v288 = vpop.permute.xlu0 %287
    %291 = vset.pattern.permute.xlu0 0
    %292 = vperm.xlu0 %291, %v284
    %v293 = vpop.permute.xlu0 %292
    %vm295 = vcmask 261120
    %v297 = vsel %vm295, %v281, 0
    %v300 = vsel %vm295, %v282, 0
    %302 = vmatprep.subr.mxu0 0.0
    %303 = vmatpush1.msra.mxu0 0.0
    %304 = vmatprep.subr.mxu0 0.0
    %305 = vmatpush1.msra.mxu0 0.0
    %306 = vmatprep.subr.mxu0 0.0
    %307 = vmatpush1.msra.mxu0 0.0
    %308 = vmatprep.subr.mxu0 0.0
    %309 = vmatpush1.msra.mxu0 0.0
    %310 = vmatprep.subr.mxu0 0.0
    %311 = vmatpush1.msra.mxu0 0.0
    %312 = vmatprep.subr.mxu0 0.0
    %313 = vmatpush1.msra.mxu0 0.0
    %314 = vmatprep.subr.mxu0 0.0
    %315 = vmatpush1.msra.mxu0 0.0
    %316 = vmatprep.subr.mxu0 0.0
    %317 = vmatpush1.msra.mxu0 0.0
    %318 = vmatprep.subr.mxu0 0.0
    %319 = vmatpush1.msra.mxu0 0.0
    %320 = vmatprep.subr.mxu0 0.0
    %321 = vmatpush1.msra.mxu0 0.0
    %322 = vmatprep.subr.mxu0 0.0
    %323 = vmatpush1.msra.mxu0 0.0
    %324 = vmatprep.subr.mxu0 0.0
    %325 = vmatpush1.msra.mxu0 0.0
    %326 = vmatprep.subr.mxu0 0.0
    %327 = vmatpush1.msra.mxu0 %v280
    %328 = vmatprep.subr.mxu0 0.0
    %329 = vmatpush1.msra.mxu0 %v279
    %330 = vmatprep.subr.mxu0 0.0
    %331 = vmatpush1.msra.mxu0 %v278
    %332 = vmatprep.subr.mxu0 0.0
    %333 = vmatpush1.msra.mxu0 %v277
    %334 = vmatprep.subr.mxu0 0.0
    %335 = vmatpush2.msra.mxu0 0.0
    %336 = vmatprep.subr.mxu0 0.0
    %337 = vmatpush2.msra.mxu0 0.0
    %338 = vmatprep.subr.mxu0 0.0
    %339 = vmatpush2.msra.mxu0 0.0
    %340 = vmatprep.subr.mxu0 0.0
    %341 = vmatpush2.msra.mxu0 0.0
    %342 = vmatprep.subr.mxu0 0.0
    %343 = vmatpush2.msra.mxu0 0.0
    %344 = vmatprep.subr.mxu0 0.0
    %345 = vmatpush2.msra.mxu0 0.0
    %346 = vmatprep.subr.mxu0 0.0
    %347 = vmatpush2.msra.mxu0 0.0
    %348 = vmatprep.subr.mxu0 0.0
    %349 = vmatpush2.msra.mxu0 0.0
    %350 = vmatprep.subr.mxu0 0.0
    %351 = vmatpush2.msra.mxu0 0.0
    %352 = vmatprep.subr.mxu0 0.0
    %353 = vmatpush2.msra.mxu0 0.0
    %354 = vmatprep.subr.mxu0 0.0
    %355 = vmatpush2.msra.mxu0 0.0
    %356 = vmatprep.subr.mxu0 0.0
    %357 = vmatpush2.msra.mxu0 0.0
    %358 = vmatprep.subr.mxu0 0.0
    %359 = vmatpush2.msra.mxu0 0.0
    %360 = vmatprep.subr.mxu0 0.0
    %361 = vmatpush2.msra.mxu0 0.0
    %362 = vmatprep.subr.mxu0 0.0
    %363 = vmatpush2.msra.mxu0 0.0
    %364 = vmatprep.subr.mxu0 0.0
    %365 = vmatpush2.msra.mxu0 0.0
    %366 = vmatprep.mubr.f32.mxu0 0.0
    %367 = vmatmul.mubr.f32.gmra.mxu0 %v297
    %v368 = vpop.f32.mrf.mxu0
    %v369 = vadd.f32 %v288, %v368
    %v370 = vpop.f32.mrf.mxu0
    %371 = vmatprep.mubr.f32.mxu0 0.0
    %372 = vmatmul.mubr.f32.gmra.mxu0 %v300
    %v373 = vpop.f32.mrf.mxu0
    %v374 = vadd.f32 %v293, %v373
    %v375 = vpop.f32.mrf.mxu0
    %376 = vdwg.mxu0
    %v377 = vlaneseq
    %v378 = vshrl.u32 %v377, 7
    %v379 = vadd.s32 %v378, 8
    %v380 = vlaneseq
    %v381 = vand.u32 %v380, 127
    %vm382 = vcmp.eq.s32.totalorder %v378, %v381
    %vm383 = vcmp.eq.s32.totalorder %v379, %v381
    %v384 = vsel %vm382, 1, 0
    %v385 = vsel %vm383, 1, 0
    %v386 = vcvt.s32.f32 %v384
    %v387 = vcvt.s32.f32 %v385
    %v388 = vld [vmem:[%s2] sm:$0xff]
    %v390 = vsel %vm172, %v386, 0
    %v393 = vsel %vm172, %v387, 0
    %v396 = vsel %vm172, %v388, 0
    %398 = vmatprep.subr.mxu0 0.0
    %399 = vmatpush1.xpose.msra.mxu0 0.0
    %400 = vmatprep.subr.mxu0 0.0
    %401 = vmatpush1.xpose.msra.mxu0 0.0
    %402 = vmatprep.subr.mxu0 0.0
    %403 = vmatpush1.xpose.msra.mxu0 0.0
    %404 = vmatprep.subr.mxu0 0.0
    %405 = vmatpush1.xpose.msra.mxu0 0.0
    %406 = vmatprep.subr.mxu0 0.0
    %407 = vmatpush1.xpose.msra.mxu0 0.0
    %408 = vmatprep.subr.mxu0 0.0
    %409 = vmatpush1.xpose.msra.mxu0 0.0
    %410 = vmatprep.subr.mxu0 0.0
    %411 = vmatpush1.xpose.msra.mxu0 0.0
    %412 = vmatprep.subr.mxu0 0.0
    %413 = vmatpush1.xpose.msra.mxu0 0.0
    %414 = vmatprep.subr.mxu0 0.0
    %415 = vmatpush1.xpose.msra.mxu0 0.0
    %416 = vmatprep.subr.mxu0 0.0
    %417 = vmatpush1.xpose.msra.mxu0 0.0
    %418 = vmatprep.subr.mxu0 0.0
    %419 = vmatpush1.xpose.msra.mxu0 0.0
    %420 = vmatprep.subr.mxu0 0.0
    %421 = vmatpush1.xpose.msra.mxu0 0.0
    %422 = vmatprep.subr.mxu0 0.0
    %423 = vmatpush1.xpose.msra.mxu0 0.0
    %424 = vmatprep.subr.mxu0 0.0
    %425 = vmatpush1.xpose.msra.mxu0 0.0
    %426 = vmatprep.subr.mxu0 0.0
    %427 = vmatpush1.xpose.msra.mxu0 0.0
    %428 = vmatprep.subr.mxu0 0.0
    %429 = vmatpush1.xpose.msra.mxu0 %v396
    %430 = vmatprep.subr.mxu0 0.0
    %431 = vmatpush2.xpose.msra.mxu0 0.0
    %432 = vmatprep.subr.mxu0 0.0
    %433 = vmatpush2.xpose.msra.mxu0 0.0
    %434 = vmatprep.subr.mxu0 0.0
    %435 = vmatpush2.xpose.msra.mxu0 0.0
    %436 = vmatprep.subr.mxu0 0.0
    %437 = vmatpush2.xpose.msra.mxu0 0.0
    %438 = vmatprep.subr.mxu0 0.0
    %439 = vmatpush2.xpose.msra.mxu0 0.0
    %440 = vmatprep.subr.mxu0 0.0
    %441 = vmatpush2.xpose.msra.mxu0 0.0
    %442 = vmatprep.subr.mxu0 0.0
    %443 = vmatpush2.xpose.msra.mxu0 0.0
    %444 = vmatprep.subr.mxu0 0.0
    %445 = vmatpush2.xpose.msra.mxu0 0.0
    %446 = vmatprep.subr.mxu0 0.0
    %447 = vmatpush2.xpose.msra.mxu0 0.0
    %448 = vmatprep.subr.mxu0 0.0
    %449 = vmatpush2.xpose.msra.mxu0 0.0
    %450 = vmatprep.subr.mxu0 0.0
    %451 = vmatpush2.xpose.msra.mxu0 0.0
    %452 = vmatprep.subr.mxu0 0.0
    %453 = vmatpush2.xpose.msra.mxu0 0.0
    %454 = vmatprep.subr.mxu0 0.0
    %455 = vmatpush2.xpose.msra.mxu0 0.0
    %456 = vmatprep.subr.mxu0 0.0
    %457 = vmatpush2.xpose.msra.mxu0 0.0
    %458 = vmatprep.subr.mxu0 0.0
    %459 = vmatpush2.xpose.msra.mxu0 0.0
    %460 = vmatprep.subr.mxu0 0.0
    %461 = vmatpush2.xpose.msra.mxu0 0.0
    %462 = vmatprep.mubr.f32.mxu0 0.0
    %463 = vmatmul.mubr.f32.gmra.mxu0 %v390
    %v464 = vpop.f32.mrf.mxu0
    %v465 = vadd.f32 0.0, %v464
    %v466 = vpop.f32.mrf.mxu0
    %467 = vmatprep.mubr.f32.mxu0 0.0
    %468 = vmatmul.mubr.f32.gmra.mxu0 %v393
    %v469 = vpop.f32.mrf.mxu0
    %v470 = vadd.f32 0.0, %v469
    %v471 = vpop.f32.mrf.mxu0
    %472 = vdwg.mxu0
    %v473 = vsub.f32 %v369, %v465
    %v474 = vsub.f32 %v374, %v470
    %v475 = vmul.f32 %v473, %v473
    %v476 = vmul.f32 %v474, %v474
    %vm477 = vcmask 64512
    %v478 = vsel %vm477, %v475, 0.0
    %v479 = vsel %vm477, %v476, 0.0
    %v480 = vadd.f32 %v478, %v479
    %v481 = vrot.slane %v480, 4
    %v482 = vadd.f32 %v480, %v481
    %v483 = vrot.slane %v482, 2
    %v484 = vadd.f32 %v482, %v483
    %v485 = vrot.slane %v484, 1
    %v486 = vadd.f32 %v484, %v485
    %v487 = vmul.f32 %v486, 0.0625
    %vm488 = vcmask 57344
    %489 = vst.msk [vmem:[#allocation2] sm:$0x1] %vm488, %v487
    // Predicated region
    $region34: #{tpu_custom_call.1} parent=1 // pred_check
      _
    $region35: #{tpu_custom_call.1} parent=1 // pred_check_branch
      %491 = sbr.rel (0) target = $region37
    $region36: #{tpu_custom_call.1} parent=1 // pred_region
      %s493 = ssub.s32 16, 16
      %494 = vsyncadd [#allocation3], %s493
      %s496 = sshll.u32 [#allocation2], 4
      %s497 = int_to_ptr.vmem [resolvable:$true] %s496
      %499 = dma.vmem_to_hbm [thread:$0]  %s497, 16, %s8, [#allocation3]
    $region37: #{tpu_custom_call.1} parent=1 // pred_fallthru
      _
    // Predicated region
    $region38: #{tpu_custom_call.1} parent=1 // pred_check
      _
    $region39: #{tpu_custom_call.1} parent=1 // pred_check_branch
      %501 = sbr.rel (0) target = $region41
    $region40: #{tpu_custom_call.1} parent=1 // pred_region
      %502 = dma.done [#allocation3], 16
    $region41: #{tpu_custom_call.1} parent=1 // pred_fallthru
      _
    %503 = vsyncpa [#allocation3], 1

</llo_original>
